<compile_context>
chip_gen: v7x
topology: tpu7x:2x2x1
jax: 0.10.0
libtpu: 0.0.40
codegen_flags: <defaults>
</compile_context>

<pallas_src>
import numpy as np
import jax
import jax.numpy as jnp
from jax.experimental import pallas as pl
from jax.experimental.pallas import tpu as pltpu


def _logistic_kernel(x_ref, scale_ref, w_ref, bias_ref, out_ref):
    # x_ref:     (TB, Cs) int32 — indices into the concatenated weight row
    # scale_ref: (1,  Cs) f32   — 1/seq_len per column (0 on padding columns)
    # w_ref:     (1,  Cw) f32   — lane-dense concatenated weight tables (zero padded)
    # bias_ref:  (1,  1)  f32   — SMEM scalar
    # out_ref:   (1, TB)  f32   — lane-dense output block
    x = x_ref[...]
    tb, _ = x.shape
    cw = w_ref.shape[-1]

    # Direct VMEM gather: vals[b, j] = W[0, x[b, j]].  Broadcasting the weight
    # row over sublanes and using take_along_axis gives the canonical lane
    # dynamic-gather pattern (no MXU one-hot, no (B*S, V) intermediates).
    # NOTE: the broadcast is expected to fold into the gather; if a bundle dump
    # shows it materializing, switch to a stride-0 sublane read
    # (w_ref[pl.ds(0, tb, stride=0), :]).
    w_rows = jnp.broadcast_to(w_ref[...], (tb, cw))
    vals = jnp.take_along_axis(w_rows, x, axis=1, mode="promise_in_bounds")  # (tb, Cs)

    acc = jnp.sum(vals * scale_ref[...], axis=1)             # (tb,)
    out_ref[...] = acc.reshape(1, tb) + bias_ref[0, 0]


def _round_up(x, m):
    return (x + m - 1) // m * m


def _pick_block_b(b, cs, requested=None):
    """Batch-tile size: as large as the VMEM budget allows (multiple of 128)."""
    if requested is not None:
        assert requested % 128 == 0, "block_b must be a multiple of 128 (lane axis)"
        return requested
    # Double-buffered index tile is the dominant VMEM consumer: 2*block_b*cs*4 B.
    vmem_budget = 8 << 20                       # fits v5e's 16 MiB scoped default
    bb = (vmem_budget // (8 * cs)) // 128 * 128
    bb = int(max(128, min(4096, bb)))
    if b > 128:
        # keep >= 2 grid steps so v7x's two TensorCores both get work
        bb = min(bb, _round_up(-(-b // 2), 128))
    return min(bb, _round_up(b, 128))


def logistic_forward(x_idx, scale, w_row, bias, *, block_b=None):
    """x_idx: (B, Cs) int32, scale: (1, Cs) f32, w_row: (1, Cw) f32, bias: (1, 1) f32.

    Cs and Cw must be multiples of 128; every index must lie in [0, Cw)
    (out-of-range indices read garbage VMEM — validate upstream).
    Returns (B,) f32.
    """
    b, cs = x_idx.shape
    cw = w_row.shape[-1]
    assert cs % 128 == 0 and cw % 128 == 0
    assert scale.shape == (1, cs) and w_row.shape == (1, cw)
    assert bias.shape == (1, 1)

    block_b = _pick_block_b(b, cs, block_b)
    assert block_b % 128 == 0
    bp = _round_up(b, block_b)
    x_pad = jnp.pad(x_idx, ((0, bp - b), (0, 0))) if bp != b else x_idx

    # Per-grid-step VMEM: double-buffered index tile + pinned rows + output
    # double-buffer + in-kernel temporaries.  Must fit with headroom on v5e
    # (16 MiB scoped default, raised below) and v7x (64 MiB physical, 2 cores).
    tile_bytes = (2 * block_b * cs * 4            # index double-buffer
                  + 2 * (cs + cw) * 4             # scale + weight row buffers
                  + 2 * block_b * 4               # output double-buffer
                  + block_b * (2 * cs + cw) * 4)  # temps: w_rows, vals, vals*scale
    assert tile_bytes < (24 << 20), "batch tile too large for cross-gen VMEM budget"

    out = pl.pallas_call(
        _logistic_kernel,
        out_shape=jax.ShapeDtypeStruct((1, bp), jnp.float32),
        grid_spec=pltpu.PrefetchScalarGridSpec(
            num_scalar_prefetch=0,
            grid=(bp // block_b,),
            in_specs=[
                pl.BlockSpec((block_b, cs), lambda i: (i, 0)),      # batch-tiled idx
                pl.BlockSpec((1, cs), lambda i: (0, 0)),            # pinned scale row
                pl.BlockSpec((1, cw), lambda i: (0, 0)),            # pinned weight row
                pl.BlockSpec(memory_space=pltpu.MemorySpace.SMEM),  # bias scalar
            ],
            out_specs=pl.BlockSpec((1, block_b), lambda i: (0, i)),  # lane-dense out
        ),
        compiler_params=pltpu.CompilerParams(
            dimension_semantics=("parallel",),
            vmem_limit_bytes=32 * 1024 * 1024),
    )(x_pad, scale, w_row, bias)
    return out[0, :b]


if __name__ == "__main__":
    key = jax.random.PRNGKey(0)

    # Synthetic feature config (hist_items shares the item_id embedding table).
    features = {
        "user_id":    {"vocab": list(range(50)), "shared_embed_name": None},
        "item_id":    {"vocab": list(range(40)), "shared_embed_name": None},
        "tags":       {"vocab": list(range(30)), "shared_embed_name": None},
        "hist_items": {"vocab": list(range(40)), "shared_embed_name": "item_id"},
    }
    seq_lens = {"user_id": 1, "item_id": 1, "tags": 5, "hist_items": 4}
    B = 200  # exercises in-wrapper batch padding and a 2-step "parallel" grid

    # --- deterministic parameter init (normal std=1e-4 weights, zero bias) ---
    weights, k = {}, key
    for name, feat in features.items():
        if feat["shared_embed_name"] is not None:
            continue
        k, sub = jax.random.split(k)
        weights[name] = jax.random.normal(sub, (len(feat["vocab"]), 1), jnp.float32) * 1e-4
    bias = jnp.zeros((1, 1), jnp.float32)

    # --- deterministic integer index inputs per feature ---
    inputs = {}
    for name, feat in features.items():
        k, sub = jax.random.split(k)
        table = feat["shared_embed_name"] or name
        vocab_size = len(features[table]["vocab"])
        inputs[name] = jax.random.randint(sub, (B, seq_lens[name]), 0, vocab_size, jnp.int32)

    # --- concatenated weight tables with per-table offsets, lane-dense (1, Cw) ---
    offsets, w_list, off = {}, [], 0
    for name, w in weights.items():
        offsets[name] = off
        w_list.append(w[:, 0])
        off += w.shape[0]
    w_flat = jnp.concatenate(w_list)                   # (V_total,)
    V = w_flat.shape[0]
    Cw = 128 * pl.cdiv(V, 128)                         # weight width: vocab only
    w_row = jnp.pad(w_flat, (0, Cw - V)).reshape(1, Cw)

    # --- concatenated index / scale tensors, padded to Cs (decoupled from Cw) ---
    x_parts, scale_parts = [], []
    for name, feat in features.items():
        table = feat["shared_embed_name"] or name
        x = inputs[name] + offsets[table]
        seq = x.shape[1]
        x_parts.append(x)
        scale_parts.append(jnp.full((1, seq), 1.0 / seq, jnp.float32))
    X_all = jnp.concatenate(x_parts, axis=1)           # (B, S_total)
    scale = jnp.concatenate(scale_parts, axis=1)       # (1, S_total)
    S = X_all.shape[1]
    Cs = 128 * pl.cdiv(S, 128)                         # index width: seq-len only
    # Padding columns use index 0 with scale 0, so they contribute nothing
    # (W[0] is finite by construction).
    X_all = jnp.pad(X_all, ((0, 0), (0, Cs - S)))
    scale = jnp.pad(scale, ((0, 0), (0, Cs - S)))

    out = jax.block_until_ready(logistic_forward(X_all, scale, w_row, bias))

    # --- pure-JAX reference of the PyTorch forward ---
    ref_parts = []
    for name, feat in features.items():
        table = feat["shared_embed_name"] or name
        emb = weights[table][inputs[name]]             # (B, seq, 1)
        ref_parts.append(jnp.mean(emb, axis=1))        # (B, 1)
    ref = jnp.sum(jnp.concatenate(ref_parts, axis=-1), axis=-1) + bias[0, 0]

    np.testing.assert_allclose(np.asarray(out), np.asarray(ref), rtol=1e-5, atol=1e-7)
    print("KERNEL_OK")
</pallas_src>

<mosaic_0001>
module attributes {stable_mosaic.version = 11 : i64} {
  func.func @_logistic_kernel(%arg0: i32, %arg1: memref<128x128xi32, #tpu.memory_space<vmem>>, %arg2: memref<1x128xf32, #tpu.memory_space<vmem>>, %arg3: memref<1x128xf32, #tpu.memory_space<vmem>>, %arg4: memref<1x1xf32, #tpu.memory_space<smem>>, %arg5: memref<1x128xf32, #tpu.memory_space<vmem>>) attributes {dimension_semantics = [#tpu.dimension_semantics<parallel>], iteration_bounds = array<i64: 2>, scalar_prefetch = 0 : i64, scratch_operands = 0 : i64, tpu.core_type = #tpu.core_type<tc>, window_params = [{transform_indices = @transform_0, window_bounds = array<i64: 128, 128>}, {pipeline_mode = #tpu.pipeline_mode<synchronous>, transform_indices = @transform_1, window_bounds = array<i64: 1, 128>}, {pipeline_mode = #tpu.pipeline_mode<synchronous>, transform_indices = @transform_2, window_bounds = array<i64: 1, 128>}, {transform_indices = @transform_3, window_bounds = array<i64: 1, 1>}, {transform_indices = @transform_4, window_bounds = array<i64: 1, 128>}]} {
    %c0 = arith.constant 0 : index
    %c0_0 = arith.constant 0 : index
    %0 = vector.load %arg1[%c0, %c0_0] : memref<128x128xi32, #tpu.memory_space<vmem>>, vector<128x128xi32>
    %c0_1 = arith.constant 0 : index
    %c0_2 = arith.constant 0 : index
    %1 = vector.load %arg3[%c0_1, %c0_2] : memref<1x128xf32, #tpu.memory_space<vmem>>, vector<1x128xf32>
    %2 = vector.shape_cast %1 : vector<1x128xf32> to vector<1x128xf32>
    %3 = vector.broadcast %2 : vector<1x128xf32> to vector<128x128xf32>
    %4 = vector.shape_cast %0 : vector<128x128xi32> to vector<128x128x1xi32>
    %5 = vector.shape_cast %4 : vector<128x128x1xi32> to vector<128x128xi32>
    %6 = tpu.dynamic_gather %3[%5] in [1] : vector<128x128xf32>, vector<128x128xi32> -> vector<128x128xf32>
    %c0_3 = arith.constant 0 : index
    %c0_4 = arith.constant 0 : index
    %7 = vector.load %arg2[%c0_3, %c0_4] : memref<1x128xf32, #tpu.memory_space<vmem>>, vector<1x128xf32>
    %8 = vector.broadcast %7 : vector<1x128xf32> to vector<128x128xf32>
    %9 = arith.mulf %6, %8 : vector<128x128xf32>
    %cst = arith.constant dense<0.000000e+00> : vector<128xf32>
    %10 = vector.multi_reduction <add>, %9, %cst [1] : vector<128x128xf32> to vector<128xf32>
    %11 = vector.shape_cast %10 : vector<128xf32> to vector<1x128xf32>
    %c0_5 = arith.constant 0 : index
    %c0_6 = arith.constant 0 : index
    %12 = memref.load %arg4[%c0_5, %c0_6] : memref<1x1xf32, #tpu.memory_space<smem>>
    %13 = vector.broadcast %12 : f32 to vector<1x128xf32>
    %14 = arith.addf %11, %13 : vector<1x128xf32>
    %c0_7 = arith.constant 0 : index
    %c0_8 = arith.constant 0 : index
    %15 = vector.load %arg5[%c0_7, %c0_8] : memref<1x128xf32, #tpu.memory_space<vmem>>, vector<1x128xf32>
    tpu.vector_store %arg5[%c0_7, %c0_8], %14 {strides = array<i32>} : memref<1x128xf32, #tpu.memory_space<vmem>>, vector<1x128xf32>,
    return
  }
  func.func @transform_0(%arg0: i32) -> (i32, i32) {
    %c0_i32 = arith.constant 0 : i32
    %c0_i32_0 = arith.constant 0 : i32
    return %arg0, %c0_i32 : i32, i32
  }
  func.func @transform_1(%arg0: i32) -> (i32, i32) {
    %c0_i32 = arith.constant 0 : i32
    %c0_i32_0 = arith.constant 0 : i32
    %c0_i32_1 = arith.constant 0 : i32
    return %c0_i32, %c0_i32_0 : i32, i32
  }
  func.func @transform_2(%arg0: i32) -> (i32, i32) {
    %c0_i32 = arith.constant 0 : i32
    %c0_i32_0 = arith.constant 0 : i32
    %c0_i32_1 = arith.constant 0 : i32
    return %c0_i32, %c0_i32_0 : i32, i32
  }
  func.func @transform_3(%arg0: i32) -> (i32, i32) {
    %c0_i32 = arith.constant 0 : i32
    %c0_i32_0 = arith.constant 0 : i32
    %c0_i32_1 = arith.constant 0 : i32
    return %c0_i32, %c0_i32_0 : i32, i32
  }
  func.func @transform_4(%arg0: i32) -> (i32, i32) {
    %c0_i32 = arith.constant 0 : i32
    %c0_i32_0 = arith.constant 0 : i32
    return %c0_i32, %arg0 : i32, i32
  }
}

</mosaic_0001>

<llo_original>
// kernel: tpu_custom_call.1
$region0: #{tpu_custom_call.1}
  #allocation0 [shape = 'u32[]', space=smem, size = 0x4, offset = 0x4, fixed_abs, tag = 'smem constant byte address 0x4 - core index']
  #allocation1 [shape = 'u32[144,128]{1,0:T(1,128)}', space=vmem, size = 0x12000, scoped, tag = 'internal scratch']
  #allocation2 [shape = 'f32[1,1]{1,0:T(1,128)S(6)}', space=smem, size = 0x200, scoped, tag = 'scoped memory for tpu_custom_call.1']
  %s0 = inlined_call_operand.hbm [shape: s32[256,128], index: 0, kind: input, shape index: {}]
  %s1 = inlined_call_operand.vmem [shape: f32[1,128], index: 1, kind: input, shape index: {}]
  %s2 = inlined_call_operand.vmem [shape: f32[1,128], index: 2, kind: input, shape index: {}]
  %s3 = inlined_call_operand.<no memory space> [shape: f32[1,1], index: 3, kind: input, shape index: {}]
  %s4 = inlined_call_operand.hbm [shape: f32[1,256], index: 4, kind: output, shape index: {}]
  %s5 = sld [smem:[#allocation0]]
  $region53: #{tpu_custom_call.1} parent=0
    _
  %s7 = ssub.s32 1, %s5
  %s8 = scalar_select 0, %s7, %s5
  %9 = sst [smem:[#allocation2]] %s3
  $region1: #{tpu_custom_call.1} parent=0
    #allocation3 [shape = 'u8[131072]{0}', space=vmem, size = 0x20000, scoped, tag = 'input window, operand 0']
    #allocation4 [shape = 's32[2]{0}', space=sflag, size = 0x8, scoped, tag = 'scoped memory for tpu_custom_call.1']
    #allocation5 [shape = 's32[2]{0}', space=sflag, size = 0x8, scoped, tag = 'scoped memory for tpu_custom_call.1']
    #allocation6 [shape = 'u8[1024]{0}', space=vmem, size = 0x400, scoped, tag = 'output window, operand 0']
    %10 = vsyncpa [#allocation4], 0
    %s11 = scalar_lea.sflag [#allocation4], 1
    %12 = vsyncpa %s11, 0
    %13 = vsyncpa [#allocation5], 0
    %s14 = scalar_lea.sflag [#allocation5], 1
    %15 = vsyncpa %s14, 0
    loop: start=0, step=1, limit=4
    $region2: #{tpu_custom_call.1} parent=1 // loop_pre_header
      _
    $region3: #{tpu_custom_call.1} parent=1 // loop_header
      %s17 = sphi 0, %s21
      %p18 = scmp.ge.s32.totalorder %s17, 4
      %s27 = sphi 0, %s29
      %s30 = sphi 0, %s27
      %s31 = sphi 0, %s30
      %s47 = sphi 0, %s31
      %s51 = sphi 0, %s51
      %s53 = sphi 0, %s51
      %s54 = sphi 0, %s53
      %s68 = sphi 0, %s54
      %s72 = sphi 0, %s72
      %s74 = sphi 0, %s72
      %s75 = sphi 0, %s74
      %s89 = sphi 0, %s75
      %s93 = sphi 0, %s93
      %s95 = sphi 0, %s93
      %s96 = sphi 0, %s95
      %s110 = sphi 0, %s96
      %s116 = sphi 0, %s118
      %s119 = sphi 0, %s116
      %s120 = sphi 0, %s119
      %s136 = sphi 0, %s120
    $region4: #{tpu_custom_call.1} parent=1 // loop_header_branch
      %20 = sbr.rel (%p18) target = $region8
    $region5: #{tpu_custom_call.1} parent=1 // loop_body
      %s22 = ssub.s32 %s17, 1
      %s23 = ssub.s32 %s17, 2
      %s24 = sadd.s32 %s17, 1
      %s25 = ssub.s32 %s17, %s24
      %p26 = scmp.eq.s32.totalorder %s25, 0
      %s28 = sadd.s32 %s27, 1
      %s29 = scalar_select %p26, %s27, %s28
      %p32 = pneg %p26
      %p33 = scmp.eq.s32.totalorder %s17, 1
      %p34 = por %p32, %p33
      %p35 = scmp.ne.s32.totalorder %s27, %s30
      %p36 = scmp.eq.s32.totalorder %s17, 0
      %p37 = por %p35, %p36
      %p38 = scmp.ne.s32.totalorder %s27, %s30
      %p39 = scmp.eq.s32.totalorder %s22, 1
      %p40 = por %p38, %p39
      %p41 = scmp.ne.s32.totalorder %s30, %s31
      %p42 = scmp.eq.s32.totalorder %s22, 0
      %p43 = por %p41, %p42
      %p44 = scmp.ne.s32.totalorder %s30, %s31
      %p45 = scmp.eq.s32.totalorder %s23, 1
      %p46 = por %p44, %p45
      %p48 = scmp.ne.s32.totalorder %s31, %s47
      %p49 = scmp.eq.s32.totalorder %s23, 0
      %p50 = por %p48, %p49
      %s52 = sadd.s32 %s51, 1
      %p55 = scmp.eq.s32.totalorder %s17, 1
      %p56 = scmp.ne.s32.totalorder %s51, %s53
      %p57 = scmp.eq.s32.totalorder %s17, 0
      %p58 = por %p56, %p57
      %p59 = scmp.ne.s32.totalorder %s51, %s53
      %p60 = scmp.eq.s32.totalorder %s22, 1
      %p61 = por %p59, %p60
      %p62 = scmp.ne.s32.totalorder %s53, %s54
      %p63 = scmp.eq.s32.totalorder %s22, 0
      %p64 = por %p62, %p63
      %p65 = scmp.ne.s32.totalorder %s53, %s54
      %p66 = scmp.eq.s32.totalorder %s23, 1
      %p67 = por %p65, %p66
      %p69 = scmp.ne.s32.totalorder %s54, %s68
      %p70 = scmp.eq.s32.totalorder %s23, 0
      %p71 = por %p69, %p70
      %s73 = sadd.s32 %s72, 1
      %p76 = scmp.eq.s32.totalorder %s17, 1
      %p77 = scmp.ne.s32.totalorder %s72, %s74
      %p78 = scmp.eq.s32.totalorder %s17, 0
      %p79 = por %p77, %p78
      %p80 = scmp.ne.s32.totalorder %s72, %s74
      %p81 = scmp.eq.s32.totalorder %s22, 1
      %p82 = por %p80, %p81
      %p83 = scmp.ne.s32.totalorder %s74, %s75
      %p84 = scmp.eq.s32.totalorder %s22, 0
      %p85 = por %p83, %p84
      %p86 = scmp.ne.s32.totalorder %s74, %s75
      %p87 = scmp.eq.s32.totalorder %s23, 1
      %p88 = por %p86, %p87
      %p90 = scmp.ne.s32.totalorder %s75, %s89
      %p91 = scmp.eq.s32.totalorder %s23, 0
      %p92 = por %p90, %p91
      %s94 = sadd.s32 %s93, 1
      %p97 = scmp.eq.s32.totalorder %s17, 1
      %p98 = scmp.ne.s32.totalorder %s93, %s95
      %p99 = scmp.eq.s32.totalorder %s17, 0
      %p100 = por %p98, %p99
      %p101 = scmp.ne.s32.totalorder %s93, %s95
      %p102 = scmp.eq.s32.totalorder %s22, 1
      %p103 = por %p101, %p102
      %p104 = scmp.ne.s32.totalorder %s95, %s96
      %p105 = scmp.eq.s32.totalorder %s22, 0
      %p106 = por %p104, %p105
      %p107 = scmp.ne.s32.totalorder %s95, %s96
      %p108 = scmp.eq.s32.totalorder %s23, 1
      %p109 = por %p107, %p108
      %p111 = scmp.ne.s32.totalorder %s96, %s110
      %p112 = scmp.eq.s32.totalorder %s23, 0
      %p113 = por %p111, %p112
      %s114 = ssub.s32 %s17, %s24
      %p115 = scmp.eq.s32.totalorder %s114, 0
      %s117 = sadd.s32 %s116, 1
      %s118 = scalar_select %p115, %s116, %s117
      %p121 = pneg %p115
      %p122 = scmp.eq.s32.totalorder %s17, 1
      %p123 = por %p121, %p122
      %p124 = scmp.ne.s32.totalorder %s116, %s119
      %p125 = scmp.eq.s32.totalorder %s17, 0
      %p126 = por %p124, %p125
      %p127 = scmp.ne.s32.totalorder %s116, %s119
      %p128 = scmp.eq.s32.totalorder %s22, 1
      %p129 = por %p127, %p128
      %p130 = scmp.ne.s32.totalorder %s119, %s120
      %p131 = scmp.eq.s32.totalorder %s22, 0
      %p132 = por %p130, %p131
      %p133 = scmp.ne.s32.totalorder %s119, %s120
      %p134 = scmp.eq.s32.totalorder %s23, 1
      %p135 = por %p133, %p134
      %p137 = scmp.ne.s32.totalorder %s120, %s136
      %p138 = scmp.eq.s32.totalorder %s23, 0
      %p139 = por %p137, %p138
      %p140 = scmp.le.s32.totalorder 1, %s17
      %p141 = scmp.lt.s32.totalorder %s17, 3
      %p142 = pnand %p140, %p141
      %p143 = pneg %p142
      // Predicated region
      $region9: #{tpu_custom_call.1} parent=5 // pred_check
        _
      $region10: #{tpu_custom_call.1} parent=5 // pred_check_branch
        %145 = sbr.rel (%p142) target = $region12
      $region11: #{tpu_custom_call.1} parent=5 // pred_region
        %s146 = ssub.s32 %s17, 1
        // Predicated region
        $region13: #{tpu_custom_call.1} parent=11 // pred_check
          %p147 = pneg %p64
        $region14: #{tpu_custom_call.1} parent=11 // pred_check_branch
          %149 = sbr.rel (%p147) target = $region16
        $region15: #{tpu_custom_call.1} parent=11 // pred_region
          _
        $region16: #{tpu_custom_call.1} parent=11 // pred_fallthru
          _
        // Predicated region
        $region17: #{tpu_custom_call.1} parent=11 // pred_check
          %p150 = pneg %p85
        $region18: #{tpu_custom_call.1} parent=11 // pred_check_branch
          %152 = sbr.rel (%p150) target = $region20
        $region19: #{tpu_custom_call.1} parent=11 // pred_region
          _
        $region20: #{tpu_custom_call.1} parent=11 // pred_fallthru
          _
        // Predicated region
        $region21: #{tpu_custom_call.1} parent=11 // pred_check
          %p153 = pneg %p106
        $region22: #{tpu_custom_call.1} parent=11 // pred_check_branch
          %155 = sbr.rel (%p153) target = $region24
        $region23: #{tpu_custom_call.1} parent=11 // pred_region
          _
        $region24: #{tpu_custom_call.1} parent=11 // pred_fallthru
          _
      $region12: #{tpu_custom_call.1} parent=5 // pred_fallthru
        _
      %p156 = scmp.lt.s32.totalorder %s17, 2
      // Predicated region
      $region25: #{tpu_custom_call.1} parent=5 // pred_check
        %p157 = pneg %p156
      $region26: #{tpu_custom_call.1} parent=5 // pred_check_branch
        %159 = sbr.rel (%p157) target = $region28
      $region27: #{tpu_custom_call.1} parent=5 // pred_region
        // Predicated region
        $region29: #{tpu_custom_call.1} parent=27 // pred_check
          %p160 = pneg %p37
        $region30: #{tpu_custom_call.1} parent=27 // pred_check_branch
          %162 = sbr.rel (%p160) target = $region32
        $region31: #{tpu_custom_call.1} parent=27 // pred_region
          %s163 = sand.u32 %s27, 1
          %s164 = scalar_lea.sflag [#allocation4], %s163
          %s165 = sand.u32 %s27, 1
          %s166 = smul.addr %s165, 128
          %s167 = scalar_lea.vmem [#allocation3], %s166
          %s168 = smul.u32 16, %s17
          %s170 = ssub.s32 2048, 2048
          %171 = vsyncadd %s164, %s170
          %s172 = smul.addr %s168, 128
          %s173 = scalar_lea.hbm %s0, %s172
          %s174 = sshll.u32 %s167, 4
          %s175 = int_to_ptr.vmem [resolvable:$true] %s174
          %180 = dma.hbm_to_vmem [thread:$0]  %s173, 2048, %s175, %s164, 128, 128, 8
        $region32: #{tpu_custom_call.1} parent=27 // pred_fallthru
          _
      $region28: #{tpu_custom_call.1} parent=5 // pred_fallthru
        _
      %p181 = scmp.le.s32.totalorder 1, %s17
      %p182 = scmp.lt.s32.totalorder %s17, 3
      %p183 = pnand %p181, %p182
      %p184 = pneg %p183
      // Predicated region
      $region33: #{tpu_custom_call.1} parent=5 // pred_check
        _
      $region34: #{tpu_custom_call.1} parent=5 // pred_check_branch
        %186 = sbr.rel (%p183) target = $region36
      $region35: #{tpu_custom_call.1} parent=5 // pred_region
        %s187 = ssub.s32 %s17, 1
        %s188 = sand.u32 %s30, 1
        %s189 = scalar_lea.sflag [#allocation4], %s188
        %s190 = sand.u32 %s30, 1
        %s191 = smul.addr %s190, 128
        %s192 = scalar_lea.vmem [#allocation3], %s191
        // Predicated region
        $region37: #{tpu_custom_call.1} parent=35 // pred_check
          %p193 = pneg %p43
        $region38: #{tpu_custom_call.1} parent=35 // pred_check_branch
          %195 = sbr.rel (%p193) target = $region40
        $region39: #{tpu_custom_call.1} parent=35 // pred_region
          %196 = dma.done %s189, 2048
        $region40: #{tpu_custom_call.1} parent=35 // pred_fallthru
          _
        %s197 = sand.u32 %s30, 1
        %s198 = scalar_lea.sflag [#allocation4], %s197
        %s199 = sand.u32 %s30, 1
        %s200 = smul.addr %s199, 128
        %s201 = scalar_lea.vmem [#allocation3], %s200
        %p202 = pneg %p43
        %p203 = pneg %p40
        %p204 = pneg %p64
        %p205 = pneg %p61
        %p206 = pneg %p85
        %p207 = pneg %p82
        %p208 = pneg %p106
        %p209 = pneg %p103
        %p210 = pneg %p132
        %p211 = pneg %p129
        %s212 = sand.u32 %s119, 1
        %s213 = scalar_lea.sflag [#allocation5], %s212
        %s214 = sand.u32 %s119, 1
        %s215 = scalar_lea.vmem [#allocation6], %s214
        %s216 = smul.u32 16, %s22
        %v217 = vld [vmem:[%s192] sm:$0xff]
        %v218 = vld [vmem:[%s192 + $0x8] sm:$0xff]
        %v219 = vld [vmem:[%s192 + $0x10] sm:$0xff]
        %v220 = vld [vmem:[%s192 + $0x18] sm:$0xff]
        %v221 = vld [vmem:[%s192 + $0x20] sm:$0xff]
        %v222 = vld [vmem:[%s192 + $0x28] sm:$0xff]
        %v223 = vld [vmem:[%s192 + $0x30] sm:$0xff]
        %v224 = vld [vmem:[%s192 + $0x38] sm:$0xff]
        %v225 = vld [vmem:[%s192 + $0x40] sm:$0xff]
        %v226 = vld [vmem:[%s192 + $0x48] sm:$0xff]
        %v227 = vld [vmem:[%s192 + $0x50] sm:$0xff]
        %v228 = vld [vmem:[%s192 + $0x58] sm:$0xff]
        %v229 = vld [vmem:[%s192 + $0x60] sm:$0xff]
        %v230 = vld [vmem:[%s192 + $0x68] sm:$0xff]
        %v231 = vld [vmem:[%s192 + $0x70] sm:$0xff]
        %v232 = vld [vmem:[%s192 + $0x78] sm:$0xff]
        %v233 = vld [vmem:[%s2] sm:$0x1]
        %v235 = vlaneseq
        %v236 = vshrl.u32 %v235, 7
        %v237 = vsub.s32 0, %v236
        %v238 = vrot.slane %v233, %v237
        %240 = vset.pattern.permute.xlu0 %v217
        %241 = vperm.xlu0 %240, %v238
        %v242 = vpop.permute.xlu0 %241
        %243 = vset.pattern.permute.xlu0 %v218
        %244 = vperm.xlu0 %243, %v238
        %v245 = vpop.permute.xlu0 %244
        %246 = vset.pattern.permute.xlu0 %v219
        %247 = vperm.xlu0 %246, %v238
        %v248 = vpop.permute.xlu0 %247
        %249 = vset.pattern.permute.xlu0 %v220
        %250 = vperm.xlu0 %249, %v238
        %v251 = vpop.permute.xlu0 %250
        %252 = vset.pattern.permute.xlu0 %v221
        %253 = vperm.xlu0 %252, %v238
        %v254 = vpop.permute.xlu0 %253
        %255 = vset.pattern.permute.xlu0 %v222
        %256 = vperm.xlu0 %255, %v238
        %v257 = vpop.permute.xlu0 %256
        %258 = vset.pattern.permute.xlu0 %v223
        %259 = vperm.xlu0 %258, %v238
        %v260 = vpop.permute.xlu0 %259
        %261 = vset.pattern.permute.xlu0 %v224
        %262 = vperm.xlu0 %261, %v238
        %v263 = vpop.permute.xlu0 %262
        %264 = vset.pattern.permute.xlu0 %v225
        %265 = vperm.xlu0 %264, %v238
        %v266 = vpop.permute.xlu0 %265
        %267 = vset.pattern.permute.xlu0 %v226
        %268 = vperm.xlu0 %267, %v238
        %v269 = vpop.permute.xlu0 %268
        %270 = vset.pattern.permute.xlu0 %v227
        %271 = vperm.xlu0 %270, %v238
        %v272 = vpop.permute.xlu0 %271
        %273 = vset.pattern.permute.xlu0 %v228
        %274 = vperm.xlu0 %273, %v238
        %v275 = vpop.permute.xlu0 %274
        %276 = vset.pattern.permute.xlu0 %v229
        %277 = vperm.xlu0 %276, %v238
        %v278 = vpop.permute.xlu0 %277
        %279 = vset.pattern.permute.xlu0 %v230
        %280 = vperm.xlu0 %279, %v238
        %v281 = vpop.permute.xlu0 %280
        %282 = vset.pattern.permute.xlu0 %v231
        %283 = vperm.xlu0 %282, %v238
        %v284 = vpop.permute.xlu0 %283
        %285 = vset.pattern.permute.xlu0 %v232
        %286 = vperm.xlu0 %285, %v238
        %v287 = vpop.permute.xlu0 %286
        %v288 = vld [vmem:[%s1] sm:$0x1]
        %v290 = vlaneseq
        %v291 = vshrl.u32 %v290, 7
        %v292 = vsub.s32 0, %v291
        %v293 = vrot.slane %v288, %v292
        %v295 = vmul.f32 %v242, %v293
        %v296 = vmul.f32 %v245, %v293
        %v297 = vmul.f32 %v248, %v293
        %v298 = vmul.f32 %v251, %v293
        %v299 = vmul.f32 %v254, %v293
        %v300 = vmul.f32 %v257, %v293
        %v301 = vmul.f32 %v260, %v293
        %v302 = vmul.f32 %v263, %v293
        %v303 = vmul.f32 %v266, %v293
        %v304 = vmul.f32 %v269, %v293
        %v305 = vmul.f32 %v272, %v293
        %v306 = vmul.f32 %v275, %v293
        %v307 = vmul.f32 %v278, %v293
        %v308 = vmul.f32 %v281, %v293
        %v309 = vmul.f32 %v284, %v293
        %v310 = vmul.f32 %v287, %v293
        %311 = vadd.xlane.f32.xlu0 %v295
        %v312 = vpop.xlane.xlu0 %311
        %313 = vadd.xlane.f32.xlu0 %v296
        %v314 = vpop.xlane.xlu0 %313
        %315 = vadd.xlane.f32.xlu0 %v297
        %v316 = vpop.xlane.xlu0 %315
        %317 = vadd.xlane.f32.xlu0 %v298
        %v318 = vpop.xlane.xlu0 %317
        %319 = vadd.xlane.f32.xlu0 %v299
        %v320 = vpop.xlane.xlu0 %319
        %321 = vadd.xlane.f32.xlu0 %v300
        %v322 = vpop.xlane.xlu0 %321
        %323 = vadd.xlane.f32.xlu0 %v301
        %v324 = vpop.xlane.xlu0 %323
        %325 = vadd.xlane.f32.xlu0 %v302
        %v326 = vpop.xlane.xlu0 %325
        %327 = vadd.xlane.f32.xlu0 %v303
        %v328 = vpop.xlane.xlu0 %327
        %329 = vadd.xlane.f32.xlu0 %v304
        %v330 = vpop.xlane.xlu0 %329
        %331 = vadd.xlane.f32.xlu0 %v305
        %v332 = vpop.xlane.xlu0 %331
        %333 = vadd.xlane.f32.xlu0 %v306
        %v334 = vpop.xlane.xlu0 %333
        %335 = vadd.xlane.f32.xlu0 %v307
        %v336 = vpop.xlane.xlu0 %335
        %337 = vadd.xlane.f32.xlu0 %v308
        %v338 = vpop.xlane.xlu0 %337
        %339 = vadd.xlane.f32.xlu0 %v309
        %v340 = vpop.xlane.xlu0 %339
        %341 = vadd.xlane.f32.xlu0 %v310
        %v342 = vpop.xlane.xlu0 %341
        %s343 = sld [smem:[#allocation2]]
        %v344 = vstv %s343
        %v345 = vadd.f32 %v312, %v344
        %v346 = vadd.f32 %v314, %v344
        %v347 = vadd.f32 %v316, %v344
        %v348 = vadd.f32 %v318, %v344
        %v349 = vadd.f32 %v320, %v344
        %v350 = vadd.f32 %v322, %v344
        %v351 = vadd.f32 %v324, %v344
        %v352 = vadd.f32 %v326, %v344
        %v353 = vadd.f32 %v328, %v344
        %v354 = vadd.f32 %v330, %v344
        %v355 = vadd.f32 %v332, %v344
        %v356 = vadd.f32 %v334, %v344
        %v357 = vadd.f32 %v336, %v344
        %v358 = vadd.f32 %v338, %v344
        %v359 = vadd.f32 %v340, %v344
        %v360 = vadd.f32 %v342, %v344
        %v377 = vlaneseq
        %v378 = vand.u32 %v377, 127
        %v379 = vlaneseq
        %v380 = vshrl.u32 %v379, 7
        %v381 = vsub.s32 %v378, %v380
        %v382 = vrot.slane %v345, %v381
        %v383 = vadd.s32 %v378, 4294967288
        %v384 = vlaneseq
        %v385 = vshrl.u32 %v384, 7
        %v386 = vsub.s32 %v383, %v385
        %v387 = vrot.slane %v346, %v386
        %vm388 = vcmask 130112
        %v389 = vsel %vm388, %v387, %v382
        %v390 = vadd.s32 %v378, 4294967280
        %v391 = vlaneseq
        %v392 = vshrl.u32 %v391, 7
        %v393 = vsub.s32 %v390, %v392
        %v394 = vrot.slane %v347, %v393
        %vm395 = vcmask 195712
        %v396 = vsel %vm395, %v394, %v389
        %v397 = vadd.s32 %v378, 4294967272
        %v398 = vlaneseq
        %v399 = vshrl.u32 %v398, 7
        %v400 = vsub.s32 %v397, %v399
        %v401 = vrot.slane %v348, %v400
        %vm402 = vcmask 261312
        %v403 = vsel %vm402, %v401, %v396
        %v404 = vadd.s32 %v378, 4294967264
        %v405 = vlaneseq
        %v406 = vshrl.u32 %v405, 7
        %v407 = vsub.s32 %v404, %v406
        %v408 = vrot.slane %v349, %v407
        %vm409 = vcmask 326912
        %v410 = vsel %vm409, %v408, %v403
        %v411 = vadd.s32 %v378, 4294967256
        %v412 = vlaneseq
        %v413 = vshrl.u32 %v412, 7
        %v414 = vsub.s32 %v411, %v413
        %v415 = vrot.slane %v350, %v414
        %vm416 = vcmask 392512
        %v417 = vsel %vm416, %v415, %v410
        %v418 = vadd.s32 %v378, 4294967248
        %v419 = vlaneseq
        %v420 = vshrl.u32 %v419, 7
        %v421 = vsub.s32 %v418, %v420
        %v422 = vrot.slane %v351, %v421
        %vm423 = vcmask 458112
        %v424 = vsel %vm423, %v422, %v417
        %v425 = vadd.s32 %v378, 4294967240
        %v426 = vlaneseq
        %v427 = vshrl.u32 %v426, 7
        %v428 = vsub.s32 %v425, %v427
        %v429 = vrot.slane %v352, %v428
        %vm430 = vcmask 523712
        %v431 = vsel %vm430, %v429, %v424
        %v432 = vadd.s32 %v378, 4294967232
        %v433 = vlaneseq
        %v434 = vshrl.u32 %v433, 7
        %v435 = vsub.s32 %v432, %v434
        %v436 = vrot.slane %v353, %v435
        %vm437 = vcmask 589312
        %v438 = vsel %vm437, %v436, %v431
        %v439 = vadd.s32 %v378, 4294967224
        %v440 = vlaneseq
        %v441 = vshrl.u32 %v440, 7
        %v442 = vsub.s32 %v439, %v441
        %v443 = vrot.slane %v354, %v442
        %vm444 = vcmask 654912
        %v445 = vsel %vm444, %v443, %v438
        %v446 = vadd.s32 %v378, 4294967216
        %v447 = vlaneseq
        %v448 = vshrl.u32 %v447, 7
        %v449 = vsub.s32 %v446, %v448
        %v450 = vrot.slane %v355, %v449
        %vm451 = vcmask 720512
        %v452 = vsel %vm451, %v450, %v445
        %v453 = vadd.s32 %v378, 4294967208
        %v454 = vlaneseq
        %v455 = vshrl.u32 %v454, 7
        %v456 = vsub.s32 %v453, %v455
        %v457 = vrot.slane %v356, %v456
        %vm458 = vcmask 786112
        %v459 = vsel %vm458, %v457, %v452
        %v460 = vadd.s32 %v378, 4294967200
        %v461 = vlaneseq
        %v462 = vshrl.u32 %v461, 7
        %v463 = vsub.s32 %v460, %v462
        %v464 = vrot.slane %v357, %v463
        %vm465 = vcmask 851712
        %v466 = vsel %vm465, %v464, %v459
        %v467 = vadd.s32 %v378, 4294967192
        %v468 = vlaneseq
        %v469 = vshrl.u32 %v468, 7
        %v470 = vsub.s32 %v467, %v469
        %v471 = vrot.slane %v358, %v470
        %vm472 = vcmask 917312
        %v473 = vsel %vm472, %v471, %v466
        %v474 = vadd.s32 %v378, 4294967184
        %v475 = vlaneseq
        %v476 = vshrl.u32 %v475, 7
        %v477 = vsub.s32 %v474, %v476
        %v478 = vrot.slane %v359, %v477
        %vm479 = vcmask 982912
        %v480 = vsel %vm479, %v478, %v473
        %v481 = vadd.s32 %v378, 4294967176
        %v482 = vlaneseq
        %v483 = vshrl.u32 %v482, 7
        %v484 = vsub.s32 %v481, %v483
        %v485 = vrot.slane %v360, %v484
        %vm486 = vcmask 1048512
        %v487 = vsel %vm486, %v485, %v480
        %489 = vst [vmem:[%s215] sm:$0x1] %v487
        %s490 = sand.u32 %s119, 1
        %s491 = scalar_lea.sflag [#allocation5], %s490
        %s492 = sand.u32 %s119, 1
        %s493 = scalar_lea.vmem [#allocation6], %s492
        // Predicated region
        $region41: #{tpu_custom_call.1} parent=35 // pred_check
          %p494 = pneg %p129
        $region42: #{tpu_custom_call.1} parent=35 // pred_check_branch
          %496 = sbr.rel (%p494) target = $region44
        $region43: #{tpu_custom_call.1} parent=35 // pred_region
          %s498 = ssub.s32 16, 16
          %499 = vsyncadd %s491, %s498
          %s500 = smul.addr %s22, 16
          %s501 = scalar_lea.hbm %s4, %s500
          %s503 = sshll.u32 %s493, 4
          %s504 = int_to_ptr.vmem [resolvable:$true] %s503
          %506 = dma.vmem_to_hbm [thread:$0]  %s504, 16, %s501, %s491
        $region44: #{tpu_custom_call.1} parent=35 // pred_fallthru
          _
      $region36: #{tpu_custom_call.1} parent=5 // pred_fallthru
        _
      %p507 = scmp.le.s32.totalorder 2, %s17
      // Predicated region
      $region45: #{tpu_custom_call.1} parent=5 // pred_check
        %p508 = pneg %p507
      $region46: #{tpu_custom_call.1} parent=5 // pred_check_branch
        %510 = sbr.rel (%p508) target = $region48
      $region47: #{tpu_custom_call.1} parent=5 // pred_region
        %s511 = ssub.s32 %s17, 2
        // Predicated region
        $region49: #{tpu_custom_call.1} parent=47 // pred_check
          %p512 = pneg %p135
        $region50: #{tpu_custom_call.1} parent=47 // pred_check_branch
          %514 = sbr.rel (%p512) target = $region52
        $region51: #{tpu_custom_call.1} parent=47 // pred_region
          %s515 = sand.u32 %s120, 1
          %s516 = scalar_lea.sflag [#allocation5], %s515
          %s517 = sand.u32 %s120, 1
          %s518 = scalar_lea.vmem [#allocation6], %s517
          %519 = dma.done %s516, 16
        $region52: #{tpu_custom_call.1} parent=47 // pred_fallthru
          _
      $region48: #{tpu_custom_call.1} parent=5 // pred_fallthru
        _
    $region6: #{tpu_custom_call.1} parent=1 // loop_footer
      %s21 = sadd.s32 1, %s17
    $region7: #{tpu_custom_call.1} parent=1 // loop_footer_branch
      %16 = sbr.rel target = $region3
    $region8: #{tpu_custom_call.1} parent=1 // loop_exit
      _
    %520 = vsyncpa [#allocation4], 1
    %s521 = scalar_lea.sflag [#allocation4], 1
    %522 = vsyncpa %s521, 1
    %523 = vsyncpa [#allocation5], 1
    %s524 = scalar_lea.sflag [#allocation5], 1
    %525 = vsyncpa %s524, 1

</llo_original>
